<compile_context>
chip_gen: v5e
topology: v5e:2x2
jax: 0.10.0
libtpu: 0.0.40
codegen_flags: <defaults>
</compile_context>

<pallas_src>
import jax
import jax.numpy as jnp
from jax.experimental import pallas as pl
from jax.experimental.pallas import tpu as pltpu

LANE = 128  # vreg lane width; all feature dims are padded to a multiple of this
SUBLANE = 8  # vreg sublane count; batch tile must be a multiple of this


def _round_up(x, m):
    return (x + m - 1) // m * m


def qnetwork_kernel(x_ref, w_ref, b_ref, out_ref):
    """Fused 5-layer MLP on one (TB, F) activation tile.

    x_ref  : (TB, F)    bf16  activation tile (streamed over the batch grid)
    w_ref  : (5, F, F)  bf16  packed, zero-padded weights (VMEM-resident)
    b_ref  : (5, 1, F)  f32   packed, zero-padded biases  (VMEM-resident)
    out_ref: (TB, F)    f32   lane-dense output tile (cols >= action_dim are 0)
    """
    h = jnp.dot(x_ref[...], w_ref[0], preferred_element_type=jnp.float32)
    h = jnp.maximum(h + b_ref[0], 0.0)
    for layer in range(1, 4):  # hidden layers 2..4 (unrolled at trace time)
        h = jnp.dot(h.astype(jnp.bfloat16), w_ref[layer],
                    preferred_element_type=jnp.float32)
        h = jnp.maximum(h + b_ref[layer], 0.0)
    out = jnp.dot(h.astype(jnp.bfloat16), w_ref[4],
                  preferred_element_type=jnp.float32) + b_ref[4]
    out_ref[...] = out.astype(out_ref.dtype)


def pack_params(params, feat):
    """Pack 5 (w, b) pairs into one (5, F, F) bf16 slab + one (5, 1, F) f32 slab.

    Zero padding is exact: padded weight rows/cols and bias entries are 0, so
    they contribute nothing to the matmuls and ReLU(0)=0 cannot leak forward.
    """
    n = len(params)
    w_packed = jnp.zeros((n, feat, feat), jnp.float32)
    b_packed = jnp.zeros((n, 1, feat), jnp.float32)
    for i, (w, b) in enumerate(params):
        fi, fo = w.shape
        w_packed = w_packed.at[i, :fi, :fo].set(w)
        b_packed = b_packed.at[i, 0, :fo].set(b.reshape(-1))
    return w_packed.astype(jnp.bfloat16), b_packed


def qnetwork_forward(x, params, *, tb=None):
    """x: (B, state_dim) f32. params: list of (w=(in,out), b=(1,out)) f32 arrays."""
    batch, state_dim = x.shape
    action_dim = params[-1][0].shape[1]
    dims = [state_dim] + [w.shape[1] for w, _ in params]
    feat = _round_up(max(dims), LANE)  # common lane-dense feature width (128 here)

    # Adaptive batch tile: multiple of 8 sublanes, capped at 128 MXU rows.
    if tb is None:
        tb = min(LANE, _round_up(batch, SUBLANE))
    tb = _round_up(tb, SUBLANE)

    w_packed, b_packed = pack_params(params, feat)

    # Pad batch to a multiple of the batch tile and features to `feat`.
    b_pad = _round_up(batch, tb)
    x_pad = jnp.zeros((b_pad, feat), jnp.bfloat16)
    x_pad = x_pad.at[:batch, :state_dim].set(x.astype(jnp.bfloat16))

    out = pl.pallas_call(
        qnetwork_kernel,
        out_shape=jax.ShapeDtypeStruct((b_pad, feat), jnp.float32),
        grid=(b_pad // tb,),
        in_specs=[
            pl.BlockSpec((tb, feat), lambda i: (i, 0)),          # stream x tiles
            pl.BlockSpec(w_packed.shape, lambda i: (0, 0, 0)),   # weights resident
            pl.BlockSpec(b_packed.shape, lambda i: (0, 0, 0)),   # biases resident
        ],
        out_specs=pl.BlockSpec((tb, feat), lambda i: (i, 0)),
        compiler_params=pltpu.CompilerParams(
            dimension_semantics=("parallel",)),  # shard batch tiles on v7x's 2 TCs
    )(x_pad, w_packed, b_packed)

    return out[:batch, :action_dim]


def init_params(key, state_dim, action_dim, hidden_size):
    """Deterministic init mimicking nn.Linear's U(-1/sqrt(fan_in), 1/sqrt(fan_in)).

    Weights stored as (in_features, out_features) (transposed vs PyTorch),
    biases as (1, out_features), so matmuls are plain row-major GEMMs.
    """
    dims = [state_dim, hidden_size, hidden_size, hidden_size, hidden_size, action_dim]
    params = []
    for i in range(5):
        fan_in, fan_out = dims[i], dims[i + 1]
        key, kw, kb = jax.random.split(key, 3)
        bound = 1.0 / jnp.sqrt(jnp.float32(fan_in))
        w = jax.random.uniform(kw, (fan_in, fan_out), jnp.float32, -bound, bound)
        b = jax.random.uniform(kb, (1, fan_out), jnp.float32, -bound, bound)
        params.append((w, b))
    return params


def qnetwork_reference(x, params):
    """Pure-JAX reference with the same numerics (bf16 MXU inputs, f32 accumulate)."""
    h = x
    for i, (w, b) in enumerate(params):
        h = jnp.dot(h.astype(jnp.bfloat16), w.astype(jnp.bfloat16),
                    preferred_element_type=jnp.float32) + b
        if i < len(params) - 1:
            h = jnp.maximum(h, 0.0)
    return h


if __name__ == "__main__":
    state_dim, action_dim, hidden_size = 16, 4, 32
    batch = 8

    key = jax.random.PRNGKey(0)
    key, kx = jax.random.split(key)
    x = jax.random.normal(kx, (batch, state_dim), jnp.float32)
    params = init_params(key, state_dim, action_dim, hidden_size)

    out = jax.block_until_ready(qnetwork_forward(x, params))

    ref = qnetwork_reference(x, params)
    assert out.shape == (batch, action_dim)
    assert jnp.allclose(out, ref, atol=1e-2, rtol=1e-2), "mismatch vs reference"

    print("KERNEL_OK")
</pallas_src>

<mosaic_0001>
module attributes {stable_mosaic.version = 11 : i64} {
  func.func @qnetwork_kernel(%arg0: i32, %arg1: memref<8x128xbf16, #tpu.memory_space<vmem>>, %arg2: memref<5x128x128xbf16, #tpu.memory_space<vmem>>, %arg3: memref<5x1x128xf32, #tpu.memory_space<vmem>>, %arg4: memref<8x128xf32, #tpu.memory_space<vmem>>) attributes {dimension_semantics = [#tpu.dimension_semantics<parallel>], iteration_bounds = array<i64: 1>, scalar_prefetch = 0 : i64, scratch_operands = 0 : i64, tpu.core_type = #tpu.core_type<tc>, window_params = [{transform_indices = @transform_0, window_bounds = array<i64: 8, 128>}, {pipeline_mode = #tpu.pipeline_mode<synchronous>, transform_indices = @transform_1, window_bounds = array<i64: 5, 128, 128>}, {pipeline_mode = #tpu.pipeline_mode<synchronous>, transform_indices = @transform_2, window_bounds = array<i64: 5, 1, 128>}, {transform_indices = @transform_3, window_bounds = array<i64: 8, 128>}]} {
    %c0 = arith.constant 0 : index
    %c0_0 = arith.constant 0 : index
    %0 = vector.load %arg1[%c0, %c0_0] : memref<8x128xbf16, #tpu.memory_space<vmem>>, vector<8x128xbf16>
    %c0_1 = arith.constant 0 : index
    %c0_2 = arith.constant 0 : index
    %c0_3 = arith.constant 0 : index
    %1 = vector.load %arg2[%c0_1, %c0_2, %c0_3] : memref<5x128x128xbf16, #tpu.memory_space<vmem>>, vector<1x128x128xbf16>
    %2 = vector.shape_cast %1 : vector<1x128x128xbf16> to vector<128x128xbf16>
    %cst = arith.constant dense<0.000000e+00> : vector<8x128xf32>
    %3 = tpu.matmul %0, %2, %cst {dimension_numbers = #tpu.dot_dimension_numbers<[1], [0], [0], [1], [0, 0, 1, 1], [], []>} : vector<8x128xbf16>, vector<128x128xbf16>, vector<8x128xf32> -> vector<8x128xf32>
    %c0_4 = arith.constant 0 : index
    %c0_5 = arith.constant 0 : index
    %c0_6 = arith.constant 0 : index
    %4 = vector.load %arg3[%c0_4, %c0_5, %c0_6] : memref<5x1x128xf32, #tpu.memory_space<vmem>>, vector<1x1x128xf32>
    %5 = vector.shape_cast %4 : vector<1x1x128xf32> to vector<1x128xf32>
    %6 = vector.broadcast %5 : vector<1x128xf32> to vector<8x128xf32>
    %7 = arith.addf %3, %6 : vector<8x128xf32>
    %cst_7 = arith.constant 0.000000e+00 : f32
    %8 = vector.broadcast %cst_7 : f32 to vector<8x128xf32>
    %9 = arith.maximumf %7, %8 : vector<8x128xf32>
    %10 = arith.truncf %9 : vector<8x128xf32> to vector<8x128xbf16>
    %c1 = arith.constant 1 : index
    %c0_8 = arith.constant 0 : index
    %c0_9 = arith.constant 0 : index
    %11 = vector.load %arg2[%c1, %c0_8, %c0_9] : memref<5x128x128xbf16, #tpu.memory_space<vmem>>, vector<1x128x128xbf16>
    %12 = vector.shape_cast %11 : vector<1x128x128xbf16> to vector<128x128xbf16>
    %cst_10 = arith.constant dense<0.000000e+00> : vector<8x128xf32>
    %13 = tpu.matmul %10, %12, %cst_10 {dimension_numbers = #tpu.dot_dimension_numbers<[1], [0], [0], [1], [0, 0, 1, 1], [], []>} : vector<8x128xbf16>, vector<128x128xbf16>, vector<8x128xf32> -> vector<8x128xf32>
    %c1_11 = arith.constant 1 : index
    %c0_12 = arith.constant 0 : index
    %c0_13 = arith.constant 0 : index
    %14 = vector.load %arg3[%c1_11, %c0_12, %c0_13] : memref<5x1x128xf32, #tpu.memory_space<vmem>>, vector<1x1x128xf32>
    %15 = vector.shape_cast %14 : vector<1x1x128xf32> to vector<1x128xf32>
    %16 = vector.broadcast %15 : vector<1x128xf32> to vector<8x128xf32>
    %17 = arith.addf %13, %16 : vector<8x128xf32>
    %cst_14 = arith.constant 0.000000e+00 : f32
    %18 = vector.broadcast %cst_14 : f32 to vector<8x128xf32>
    %19 = arith.maximumf %17, %18 : vector<8x128xf32>
    %20 = arith.truncf %19 : vector<8x128xf32> to vector<8x128xbf16>
    %c2 = arith.constant 2 : index
    %c0_15 = arith.constant 0 : index
    %c0_16 = arith.constant 0 : index
    %21 = vector.load %arg2[%c2, %c0_15, %c0_16] : memref<5x128x128xbf16, #tpu.memory_space<vmem>>, vector<1x128x128xbf16>
    %22 = vector.shape_cast %21 : vector<1x128x128xbf16> to vector<128x128xbf16>
    %cst_17 = arith.constant dense<0.000000e+00> : vector<8x128xf32>
    %23 = tpu.matmul %20, %22, %cst_17 {dimension_numbers = #tpu.dot_dimension_numbers<[1], [0], [0], [1], [0, 0, 1, 1], [], []>} : vector<8x128xbf16>, vector<128x128xbf16>, vector<8x128xf32> -> vector<8x128xf32>
    %c2_18 = arith.constant 2 : index
    %c0_19 = arith.constant 0 : index
    %c0_20 = arith.constant 0 : index
    %24 = vector.load %arg3[%c2_18, %c0_19, %c0_20] : memref<5x1x128xf32, #tpu.memory_space<vmem>>, vector<1x1x128xf32>
    %25 = vector.shape_cast %24 : vector<1x1x128xf32> to vector<1x128xf32>
    %26 = vector.broadcast %25 : vector<1x128xf32> to vector<8x128xf32>
    %27 = arith.addf %23, %26 : vector<8x128xf32>
    %cst_21 = arith.constant 0.000000e+00 : f32
    %28 = vector.broadcast %cst_21 : f32 to vector<8x128xf32>
    %29 = arith.maximumf %27, %28 : vector<8x128xf32>
    %30 = arith.truncf %29 : vector<8x128xf32> to vector<8x128xbf16>
    %c3 = arith.constant 3 : index
    %c0_22 = arith.constant 0 : index
    %c0_23 = arith.constant 0 : index
    %31 = vector.load %arg2[%c3, %c0_22, %c0_23] : memref<5x128x128xbf16, #tpu.memory_space<vmem>>, vector<1x128x128xbf16>
    %32 = vector.shape_cast %31 : vector<1x128x128xbf16> to vector<128x128xbf16>
    %cst_24 = arith.constant dense<0.000000e+00> : vector<8x128xf32>
    %33 = tpu.matmul %30, %32, %cst_24 {dimension_numbers = #tpu.dot_dimension_numbers<[1], [0], [0], [1], [0, 0, 1, 1], [], []>} : vector<8x128xbf16>, vector<128x128xbf16>, vector<8x128xf32> -> vector<8x128xf32>
    %c3_25 = arith.constant 3 : index
    %c0_26 = arith.constant 0 : index
    %c0_27 = arith.constant 0 : index
    %34 = vector.load %arg3[%c3_25, %c0_26, %c0_27] : memref<5x1x128xf32, #tpu.memory_space<vmem>>, vector<1x1x128xf32>
    %35 = vector.shape_cast %34 : vector<1x1x128xf32> to vector<1x128xf32>
    %36 = vector.broadcast %35 : vector<1x128xf32> to vector<8x128xf32>
    %37 = arith.addf %33, %36 : vector<8x128xf32>
    %cst_28 = arith.constant 0.000000e+00 : f32
    %38 = vector.broadcast %cst_28 : f32 to vector<8x128xf32>
    %39 = arith.maximumf %37, %38 : vector<8x128xf32>
    %40 = arith.truncf %39 : vector<8x128xf32> to vector<8x128xbf16>
    %c4 = arith.constant 4 : index
    %c0_29 = arith.constant 0 : index
    %c0_30 = arith.constant 0 : index
    %41 = vector.load %arg2[%c4, %c0_29, %c0_30] : memref<5x128x128xbf16, #tpu.memory_space<vmem>>, vector<1x128x128xbf16>
    %42 = vector.shape_cast %41 : vector<1x128x128xbf16> to vector<128x128xbf16>
    %cst_31 = arith.constant dense<0.000000e+00> : vector<8x128xf32>
    %43 = tpu.matmul %40, %42, %cst_31 {dimension_numbers = #tpu.dot_dimension_numbers<[1], [0], [0], [1], [0, 0, 1, 1], [], []>} : vector<8x128xbf16>, vector<128x128xbf16>, vector<8x128xf32> -> vector<8x128xf32>
    %c4_32 = arith.constant 4 : index
    %c0_33 = arith.constant 0 : index
    %c0_34 = arith.constant 0 : index
    %44 = vector.load %arg3[%c4_32, %c0_33, %c0_34] : memref<5x1x128xf32, #tpu.memory_space<vmem>>, vector<1x1x128xf32>
    %45 = vector.shape_cast %44 : vector<1x1x128xf32> to vector<1x128xf32>
    %46 = vector.broadcast %45 : vector<1x128xf32> to vector<8x128xf32>
    %47 = arith.addf %43, %46 : vector<8x128xf32>
    %c0_35 = arith.constant 0 : index
    %c0_36 = arith.constant 0 : index
    %48 = vector.load %arg4[%c0_35, %c0_36] : memref<8x128xf32, #tpu.memory_space<vmem>>, vector<8x128xf32>
    tpu.vector_store %arg4[%c0_35, %c0_36], %47 {strides = array<i32>} : memref<8x128xf32, #tpu.memory_space<vmem>>, vector<8x128xf32>,
    return
  }
  func.func @transform_0(%arg0: i32) -> (i32, i32) {
    %c0_i32 = arith.constant 0 : i32
    %c0_i32_0 = arith.constant 0 : i32
    return %arg0, %c0_i32 : i32, i32
  }
  func.func @transform_1(%arg0: i32) -> (i32, i32, i32) {
    %c0_i32 = arith.constant 0 : i32
    %c0_i32_0 = arith.constant 0 : i32
    %c0_i32_1 = arith.constant 0 : i32
    %c0_i32_2 = arith.constant 0 : i32
    return %c0_i32, %c0_i32_0, %c0_i32_1 : i32, i32, i32
  }
  func.func @transform_2(%arg0: i32) -> (i32, i32, i32) {
    %c0_i32 = arith.constant 0 : i32
    %c0_i32_0 = arith.constant 0 : i32
    %c0_i32_1 = arith.constant 0 : i32
    %c0_i32_2 = arith.constant 0 : i32
    return %c0_i32, %c0_i32_0, %c0_i32_1 : i32, i32, i32
  }
  func.func @transform_3(%arg0: i32) -> (i32, i32) {
    %c0_i32 = arith.constant 0 : i32
    %c0_i32_0 = arith.constant 0 : i32
    return %arg0, %c0_i32 : i32, i32
  }
}

</mosaic_0001>

<llo_original>
// kernel: tpu_custom_call.1
$region0: #{tpu_custom_call.1}
  #allocation0 [shape = 'u32[]', space=smem, size = 0x4, offset = 0x4, fixed_abs, tag = 'smem constant byte address 0x4 - core index']
  #allocation1 [shape = 'u32[72,128]{1,0:T(1,128)}', space=vmem, size = 0x9000, scoped, tag = 'internal scratch']
  %s0 = inlined_call_operand.hbm [shape: bf16[8,128], index: 0, kind: input, shape index: {}]
  %s1 = inlined_call_operand.hbm [shape: bf16[5,128,128], index: 1, kind: input, shape index: {}]
  %s2 = inlined_call_operand.hbm [shape: f32[5,1,128], index: 2, kind: input, shape index: {}]
  %s3 = inlined_call_operand.hbm [shape: f32[8,128], index: 3, kind: output, shape index: {}]
  %s4 = sld [smem:[#allocation0]]
  $region34: #{tpu_custom_call.1} parent=0
    _
  %s6 = ssub.s32 1, %s4
  %s7 = scalar_select 0, %s6, %s4
  $region1: #{tpu_custom_call.1} parent=0
    #allocation2 [shape = 'u8[2048]{0}', space=vmem, size = 0x800, scoped, tag = 'input window, operand 0, single buffered']
    #allocation3 [shape = 's32[1]{0}', space=sflag, size = 0x4, scoped, tag = 'scoped memory for tpu_custom_call.1']
    #allocation4 [shape = 's32[1]{0}', space=sflag, size = 0x4, scoped, tag = 'scoped memory for tpu_custom_call.1']
    #allocation5 [shape = 'u8[163840]{0}', space=vmem, size = 0x28000, scoped, tag = 'input window, operand 1, single buffered']
    #allocation6 [shape = 's32[1]{0}', space=sflag, size = 0x4, scoped, tag = 'scoped memory for tpu_custom_call.1']
    #allocation7 [shape = 'u8[2560]{0}', space=vmem, size = 0xc00, scoped, tag = 'input window, operand 2, single buffered']
    #allocation8 [shape = 'u8[4096]{0}', space=vmem, size = 0x1000, scoped, tag = 'output window, operand 0, single buffered']
    %8 = vsyncpa [#allocation3], 0
    %9 = vsyncpa [#allocation6], 0
    %10 = vsyncpa [#allocation4], 0
    // Predicated region
    $region2: #{tpu_custom_call.1} parent=1 // pred_check
      _
    $region3: #{tpu_custom_call.1} parent=1 // pred_check_branch
      %12 = sbr.rel (0) target = $region5
    $region4: #{tpu_custom_call.1} parent=1 // pred_region
      %14 = vsyncadd [#allocation3], 0
      %s16 = sshll.u32 %s0, 4
      %s17 = int_to_ptr.hbm [resolvable:$true] %s16
      %s18 = sshll.u32 [#allocation2], 4
      %s19 = int_to_ptr.vmem [resolvable:$true] %s18
      %21 = dma.hbm_to_vmem [thread:$0]  %s17, 64, %s19, [#allocation3]
    $region5: #{tpu_custom_call.1} parent=1 // pred_fallthru
      _
    // Predicated region
    $region6: #{tpu_custom_call.1} parent=1 // pred_check
      _
    $region7: #{tpu_custom_call.1} parent=1 // pred_check_branch
      %23 = sbr.rel (0) target = $region9
    $region8: #{tpu_custom_call.1} parent=1 // pred_region
      %25 = vsyncadd [#allocation6], 0
      %s26 = sshll.u32 %s1, 4
      %s27 = int_to_ptr.hbm [resolvable:$true] %s26
      %s28 = sshll.u32 [#allocation5], 4
      %s29 = int_to_ptr.vmem [resolvable:$true] %s28
      %34 = dma.hbm_to_vmem [thread:$0]  %s27, 5120, %s29, [#allocation6], 64, 64, 4
    $region9: #{tpu_custom_call.1} parent=1 // pred_fallthru
      _
    // Predicated region
    $region10: #{tpu_custom_call.1} parent=1 // pred_check
      _
    $region11: #{tpu_custom_call.1} parent=1 // pred_check_branch
      %36 = sbr.rel (0) target = $region13
    $region12: #{tpu_custom_call.1} parent=1 // pred_region
      %38 = vsyncadd [#allocation6], 0
      %s39 = sshll.u32 %s2, 4
      %s40 = int_to_ptr.hbm [resolvable:$true] %s39
      %s41 = sshll.u32 [#allocation7], 4
      %s42 = int_to_ptr.vmem [resolvable:$true] %s41
      %47 = dma.hbm_to_vmem [thread:$0]  %s40, 80, %s42, [#allocation6], 16, 16, 1
    $region13: #{tpu_custom_call.1} parent=1 // pred_fallthru
      _
    // Predicated region
    $region14: #{tpu_custom_call.1} parent=1 // pred_check
      _
    $region15: #{tpu_custom_call.1} parent=1 // pred_check_branch
      %49 = sbr.rel (0) target = $region17
    $region16: #{tpu_custom_call.1} parent=1 // pred_region
      %51 = dma.done [#allocation3], 64
    $region17: #{tpu_custom_call.1} parent=1 // pred_fallthru
      _
    // Predicated region
    $region18: #{tpu_custom_call.1} parent=1 // pred_check
      _
    $region19: #{tpu_custom_call.1} parent=1 // pred_check_branch
      %53 = sbr.rel (0) target = $region21
    $region20: #{tpu_custom_call.1} parent=1 // pred_region
      %55 = dma.done [#allocation6], 5120
    $region21: #{tpu_custom_call.1} parent=1 // pred_fallthru
      _
    // Predicated region
    $region22: #{tpu_custom_call.1} parent=1 // pred_check
      _
    $region23: #{tpu_custom_call.1} parent=1 // pred_check_branch
      %57 = sbr.rel (0) target = $region25
    $region24: #{tpu_custom_call.1} parent=1 // pred_region
      %59 = dma.done [#allocation6], 80
    $region25: #{tpu_custom_call.1} parent=1 // pred_fallthru
      _
    %v60 = vld [vmem:[#allocation2] sm:$0xf]
    %v61 = vld [vmem:[#allocation5] sm:$0xf]
    %v62 = vld [vmem:[#allocation5 + $0x4] sm:$0xf]
    %v63 = vld [vmem:[#allocation5 + $0x8] sm:$0xf]
    %v64 = vld [vmem:[#allocation5 + $0xc] sm:$0xf]
    %v65 = vld [vmem:[#allocation5 + $0x10] sm:$0xf]
    %v66 = vld [vmem:[#allocation5 + $0x14] sm:$0xf]
    %v67 = vld [vmem:[#allocation5 + $0x18] sm:$0xf]
    %v68 = vld [vmem:[#allocation5 + $0x1c] sm:$0xf]
    %v69 = vld [vmem:[#allocation5 + $0x20] sm:$0xf]
    %v70 = vld [vmem:[#allocation5 + $0x24] sm:$0xf]
    %v71 = vld [vmem:[#allocation5 + $0x28] sm:$0xf]
    %v72 = vld [vmem:[#allocation5 + $0x2c] sm:$0xf]
    %v73 = vld [vmem:[#allocation5 + $0x30] sm:$0xf]
    %v74 = vld [vmem:[#allocation5 + $0x34] sm:$0xf]
    %v75 = vld [vmem:[#allocation5 + $0x38] sm:$0xf]
    %v76 = vld [vmem:[#allocation5 + $0x3c] sm:$0xf]
    %v77 = vld [vmem:[#allocation7] sm:$0x1]
    %v79 = vperm.slane %v77, 0
    %v97 = vunpack.c.l.b16 %v61
    %v98 = vunpack.c.l.b16 %v62
    %v99 = vunpack.c.l.b16 %v63
    %v100 = vunpack.c.l.b16 %v64
    %v101 = vunpack.c.l.b16 %v65
    %v102 = vunpack.c.l.b16 %v66
    %v103 = vunpack.c.l.b16 %v67
    %v104 = vunpack.c.l.b16 %v68
    %v105 = vunpack.c.l.b16 %v69
    %v106 = vunpack.c.l.b16 %v70
    %v107 = vunpack.c.l.b16 %v71
    %v108 = vunpack.c.l.b16 %v72
    %v109 = vunpack.c.l.b16 %v73
    %v110 = vunpack.c.l.b16 %v74
    %v111 = vunpack.c.l.b16 %v75
    %v112 = vunpack.c.l.b16 %v76
    %v113 = vpack.c.b16 %v98, %v97
    %v114 = vpack.c.b16 %v100, %v99
    %v115 = vpack.c.b16 %v102, %v101
    %v116 = vpack.c.b16 %v104, %v103
    %v117 = vpack.c.b16 %v106, %v105
    %v118 = vpack.c.b16 %v108, %v107
    %v119 = vpack.c.b16 %v110, %v109
    %v120 = vpack.c.b16 %v112, %v111
    %129 = vmatpush.bf16.msra.mxu0 %v120
    %130 = vmatpush.bf16.msra.mxu0 %v119
    %131 = vmatpush.bf16.msra.mxu0 %v118
    %132 = vmatpush.bf16.msra.mxu0 %v117
    %133 = vmatpush.bf16.msra.mxu0 %v116
    %134 = vmatpush.bf16.msra.mxu0 %v115
    %135 = vmatpush.bf16.msra.mxu0 %v114
    %136 = vmatpush.bf16.msra.mxu0 %v113
    %137 = vmatmul.bf16.gmra.mxu0 %v60
    %v138 = vpop.f32.mrf.mxu0
    %v139 = vadd.f32 %v79, %v138
    %v140 = vpop.f32.mrf.mxu0
    %141 = vdwg.mxu0
    %v142 = vmax.f32 %v139, 0.0
    %v143 = vpack.c.bf16 %v142, %v142
    %s144 = scalar_lea.vmem [#allocation5], 64
    %v145 = vld [vmem:[%s144] sm:$0xf]
    %v146 = vld [vmem:[%s144 + $0x4] sm:$0xf]
    %v147 = vld [vmem:[%s144 + $0x8] sm:$0xf]
    %v148 = vld [vmem:[%s144 + $0xc] sm:$0xf]
    %v149 = vld [vmem:[%s144 + $0x10] sm:$0xf]
    %v150 = vld [vmem:[%s144 + $0x14] sm:$0xf]
    %v151 = vld [vmem:[%s144 + $0x18] sm:$0xf]
    %v152 = vld [vmem:[%s144 + $0x1c] sm:$0xf]
    %v153 = vld [vmem:[%s144 + $0x20] sm:$0xf]
    %v154 = vld [vmem:[%s144 + $0x24] sm:$0xf]
    %v155 = vld [vmem:[%s144 + $0x28] sm:$0xf]
    %v156 = vld [vmem:[%s144 + $0x2c] sm:$0xf]
    %v157 = vld [vmem:[%s144 + $0x30] sm:$0xf]
    %v158 = vld [vmem:[%s144 + $0x34] sm:$0xf]
    %v159 = vld [vmem:[%s144 + $0x38] sm:$0xf]
    %v160 = vld [vmem:[%s144 + $0x3c] sm:$0xf]
    %s161 = scalar_lea.vmem [#allocation7], 1
    %v162 = vld [vmem:[%s161] sm:$0x1]
    %v164 = vperm.slane %v162, 0
    %v182 = vunpack.c.l.b16 %v145
    %v183 = vunpack.c.l.b16 %v146
    %v184 = vunpack.c.l.b16 %v147
    %v185 = vunpack.c.l.b16 %v148
    %v186 = vunpack.c.l.b16 %v149
    %v187 = vunpack.c.l.b16 %v150
    %v188 = vunpack.c.l.b16 %v151
    %v189 = vunpack.c.l.b16 %v152
    %v190 = vunpack.c.l.b16 %v153
    %v191 = vunpack.c.l.b16 %v154
    %v192 = vunpack.c.l.b16 %v155
    %v193 = vunpack.c.l.b16 %v156
    %v194 = vunpack.c.l.b16 %v157
    %v195 = vunpack.c.l.b16 %v158
    %v196 = vunpack.c.l.b16 %v159
    %v197 = vunpack.c.l.b16 %v160
    %v198 = vpack.c.b16 %v183, %v182
    %v199 = vpack.c.b16 %v185, %v184
    %v200 = vpack.c.b16 %v187, %v186
    %v201 = vpack.c.b16 %v189, %v188
    %v202 = vpack.c.b16 %v191, %v190
    %v203 = vpack.c.b16 %v193, %v192
    %v204 = vpack.c.b16 %v195, %v194
    %v205 = vpack.c.b16 %v197, %v196
    %214 = vmatpush.bf16.msra.mxu0 %v205
    %215 = vmatpush.bf16.msra.mxu0 %v204
    %216 = vmatpush.bf16.msra.mxu0 %v203
    %217 = vmatpush.bf16.msra.mxu0 %v202
    %218 = vmatpush.bf16.msra.mxu0 %v201
    %219 = vmatpush.bf16.msra.mxu0 %v200
    %220 = vmatpush.bf16.msra.mxu0 %v199
    %221 = vmatpush.bf16.msra.mxu0 %v198
    %222 = vmatmul.bf16.gmra.mxu0 %v143
    %v223 = vpop.f32.mrf.mxu0
    %v224 = vadd.f32 %v164, %v223
    %v225 = vpop.f32.mrf.mxu0
    %226 = vdwg.mxu0
    %v227 = vmax.f32 %v224, 0.0
    %v228 = vpack.c.bf16 %v227, %v227
    %s229 = scalar_lea.vmem [#allocation5], 128
    %v230 = vld [vmem:[%s229] sm:$0xf]
    %v231 = vld [vmem:[%s229 + $0x4] sm:$0xf]
    %v232 = vld [vmem:[%s229 + $0x8] sm:$0xf]
    %v233 = vld [vmem:[%s229 + $0xc] sm:$0xf]
    %v234 = vld [vmem:[%s229 + $0x10] sm:$0xf]
    %v235 = vld [vmem:[%s229 + $0x14] sm:$0xf]
    %v236 = vld [vmem:[%s229 + $0x18] sm:$0xf]
    %v237 = vld [vmem:[%s229 + $0x1c] sm:$0xf]
    %v238 = vld [vmem:[%s229 + $0x20] sm:$0xf]
    %v239 = vld [vmem:[%s229 + $0x24] sm:$0xf]
    %v240 = vld [vmem:[%s229 + $0x28] sm:$0xf]
    %v241 = vld [vmem:[%s229 + $0x2c] sm:$0xf]
    %v242 = vld [vmem:[%s229 + $0x30] sm:$0xf]
    %v243 = vld [vmem:[%s229 + $0x34] sm:$0xf]
    %v244 = vld [vmem:[%s229 + $0x38] sm:$0xf]
    %v245 = vld [vmem:[%s229 + $0x3c] sm:$0xf]
    %s246 = scalar_lea.vmem [#allocation7], 2
    %v247 = vld [vmem:[%s246] sm:$0x1]
    %v249 = vperm.slane %v247, 0
    %v267 = vunpack.c.l.b16 %v230
    %v268 = vunpack.c.l.b16 %v231
    %v269 = vunpack.c.l.b16 %v232
    %v270 = vunpack.c.l.b16 %v233
    %v271 = vunpack.c.l.b16 %v234
    %v272 = vunpack.c.l.b16 %v235
    %v273 = vunpack.c.l.b16 %v236
    %v274 = vunpack.c.l.b16 %v237
    %v275 = vunpack.c.l.b16 %v238
    %v276 = vunpack.c.l.b16 %v239
    %v277 = vunpack.c.l.b16 %v240
    %v278 = vunpack.c.l.b16 %v241
    %v279 = vunpack.c.l.b16 %v242
    %v280 = vunpack.c.l.b16 %v243
    %v281 = vunpack.c.l.b16 %v244
    %v282 = vunpack.c.l.b16 %v245
    %v283 = vpack.c.b16 %v268, %v267
    %v284 = vpack.c.b16 %v270, %v269
    %v285 = vpack.c.b16 %v272, %v271
    %v286 = vpack.c.b16 %v274, %v273
    %v287 = vpack.c.b16 %v276, %v275
    %v288 = vpack.c.b16 %v278, %v277
    %v289 = vpack.c.b16 %v280, %v279
    %v290 = vpack.c.b16 %v282, %v281
    %299 = vmatpush.bf16.msra.mxu0 %v290
    %300 = vmatpush.bf16.msra.mxu0 %v289
    %301 = vmatpush.bf16.msra.mxu0 %v288
    %302 = vmatpush.bf16.msra.mxu0 %v287
    %303 = vmatpush.bf16.msra.mxu0 %v286
    %304 = vmatpush.bf16.msra.mxu0 %v285
    %305 = vmatpush.bf16.msra.mxu0 %v284
    %306 = vmatpush.bf16.msra.mxu0 %v283
    %307 = vmatmul.bf16.gmra.mxu0 %v228
    %v308 = vpop.f32.mrf.mxu0
    %v309 = vadd.f32 %v249, %v308
    %v310 = vpop.f32.mrf.mxu0
    %311 = vdwg.mxu0
    %v312 = vmax.f32 %v309, 0.0
    %v313 = vpack.c.bf16 %v312, %v312
    %s314 = scalar_lea.vmem [#allocation5], 192
    %v315 = vld [vmem:[%s314] sm:$0xf]
    %v316 = vld [vmem:[%s314 + $0x4] sm:$0xf]
    %v317 = vld [vmem:[%s314 + $0x8] sm:$0xf]
    %v318 = vld [vmem:[%s314 + $0xc] sm:$0xf]
    %v319 = vld [vmem:[%s314 + $0x10] sm:$0xf]
    %v320 = vld [vmem:[%s314 + $0x14] sm:$0xf]
    %v321 = vld [vmem:[%s314 + $0x18] sm:$0xf]
    %v322 = vld [vmem:[%s314 + $0x1c] sm:$0xf]
    %v323 = vld [vmem:[%s314 + $0x20] sm:$0xf]
    %v324 = vld [vmem:[%s314 + $0x24] sm:$0xf]
    %v325 = vld [vmem:[%s314 + $0x28] sm:$0xf]
    %v326 = vld [vmem:[%s314 + $0x2c] sm:$0xf]
    %v327 = vld [vmem:[%s314 + $0x30] sm:$0xf]
    %v328 = vld [vmem:[%s314 + $0x34] sm:$0xf]
    %v329 = vld [vmem:[%s314 + $0x38] sm:$0xf]
    %v330 = vld [vmem:[%s314 + $0x3c] sm:$0xf]
    %s331 = scalar_lea.vmem [#allocation7], 3
    %v332 = vld [vmem:[%s331] sm:$0x1]
    %v334 = vperm.slane %v332, 0
    %v352 = vunpack.c.l.b16 %v315
    %v353 = vunpack.c.l.b16 %v316
    %v354 = vunpack.c.l.b16 %v317
    %v355 = vunpack.c.l.b16 %v318
    %v356 = vunpack.c.l.b16 %v319
    %v357 = vunpack.c.l.b16 %v320
    %v358 = vunpack.c.l.b16 %v321
    %v359 = vunpack.c.l.b16 %v322
    %v360 = vunpack.c.l.b16 %v323
    %v361 = vunpack.c.l.b16 %v324
    %v362 = vunpack.c.l.b16 %v325
    %v363 = vunpack.c.l.b16 %v326
    %v364 = vunpack.c.l.b16 %v327
    %v365 = vunpack.c.l.b16 %v328
    %v366 = vunpack.c.l.b16 %v329
    %v367 = vunpack.c.l.b16 %v330
    %v368 = vpack.c.b16 %v353, %v352
    %v369 = vpack.c.b16 %v355, %v354
    %v370 = vpack.c.b16 %v357, %v356
    %v371 = vpack.c.b16 %v359, %v358
    %v372 = vpack.c.b16 %v361, %v360
    %v373 = vpack.c.b16 %v363, %v362
    %v374 = vpack.c.b16 %v365, %v364
    %v375 = vpack.c.b16 %v367, %v366
    %384 = vmatpush.bf16.msra.mxu0 %v375
    %385 = vmatpush.bf16.msra.mxu0 %v374
    %386 = vmatpush.bf16.msra.mxu0 %v373
    %387 = vmatpush.bf16.msra.mxu0 %v372
    %388 = vmatpush.bf16.msra.mxu0 %v371
    %389 = vmatpush.bf16.msra.mxu0 %v370
    %390 = vmatpush.bf16.msra.mxu0 %v369
    %391 = vmatpush.bf16.msra.mxu0 %v368
    %392 = vmatmul.bf16.gmra.mxu0 %v313
    %v393 = vpop.f32.mrf.mxu0
    %v394 = vadd.f32 %v334, %v393
    %v395 = vpop.f32.mrf.mxu0
    %396 = vdwg.mxu0
    %v397 = vmax.f32 %v394, 0.0
    %v398 = vpack.c.bf16 %v397, %v397
    %s399 = scalar_lea.vmem [#allocation5], 256
    %v400 = vld [vmem:[%s399] sm:$0xf]
    %v401 = vld [vmem:[%s399 + $0x4] sm:$0xf]
    %v402 = vld [vmem:[%s399 + $0x8] sm:$0xf]
    %v403 = vld [vmem:[%s399 + $0xc] sm:$0xf]
    %v404 = vld [vmem:[%s399 + $0x10] sm:$0xf]
    %v405 = vld [vmem:[%s399 + $0x14] sm:$0xf]
    %v406 = vld [vmem:[%s399 + $0x18] sm:$0xf]
    %v407 = vld [vmem:[%s399 + $0x1c] sm:$0xf]
    %v408 = vld [vmem:[%s399 + $0x20] sm:$0xf]
    %v409 = vld [vmem:[%s399 + $0x24] sm:$0xf]
    %v410 = vld [vmem:[%s399 + $0x28] sm:$0xf]
    %v411 = vld [vmem:[%s399 + $0x2c] sm:$0xf]
    %v412 = vld [vmem:[%s399 + $0x30] sm:$0xf]
    %v413 = vld [vmem:[%s399 + $0x34] sm:$0xf]
    %v414 = vld [vmem:[%s399 + $0x38] sm:$0xf]
    %v415 = vld [vmem:[%s399 + $0x3c] sm:$0xf]
    %s416 = scalar_lea.vmem [#allocation7], 4
    %v417 = vld [vmem:[%s416] sm:$0x1]
    %v419 = vperm.slane %v417, 0
    %v437 = vunpack.c.l.b16 %v400
    %v438 = vunpack.c.l.b16 %v401
    %v439 = vunpack.c.l.b16 %v402
    %v440 = vunpack.c.l.b16 %v403
    %v441 = vunpack.c.l.b16 %v404
    %v442 = vunpack.c.l.b16 %v405
    %v443 = vunpack.c.l.b16 %v406
    %v444 = vunpack.c.l.b16 %v407
    %v445 = vunpack.c.l.b16 %v408
    %v446 = vunpack.c.l.b16 %v409
    %v447 = vunpack.c.l.b16 %v410
    %v448 = vunpack.c.l.b16 %v411
    %v449 = vunpack.c.l.b16 %v412
    %v450 = vunpack.c.l.b16 %v413
    %v451 = vunpack.c.l.b16 %v414
    %v452 = vunpack.c.l.b16 %v415
    %v453 = vpack.c.b16 %v438, %v437
    %v454 = vpack.c.b16 %v440, %v439
    %v455 = vpack.c.b16 %v442, %v441
    %v456 = vpack.c.b16 %v444, %v443
    %v457 = vpack.c.b16 %v446, %v445
    %v458 = vpack.c.b16 %v448, %v447
    %v459 = vpack.c.b16 %v450, %v449
    %v460 = vpack.c.b16 %v452, %v451
    %469 = vmatpush.bf16.msra.mxu0 %v460
    %470 = vmatpush.bf16.msra.mxu0 %v459
    %471 = vmatpush.bf16.msra.mxu0 %v458
    %472 = vmatpush.bf16.msra.mxu0 %v457
    %473 = vmatpush.bf16.msra.mxu0 %v456
    %474 = vmatpush.bf16.msra.mxu0 %v455
    %475 = vmatpush.bf16.msra.mxu0 %v454
    %476 = vmatpush.bf16.msra.mxu0 %v453
    %477 = vmatmul.bf16.gmra.mxu0 %v398
    %v478 = vpop.f32.mrf.mxu0
    %v479 = vadd.f32 %v419, %v478
    %v480 = vpop.f32.mrf.mxu0
    %481 = vdwg.mxu0
    %482 = vst [vmem:[#allocation8] sm:$0xff] %v479
    // Predicated region
    $region26: #{tpu_custom_call.1} parent=1 // pred_check
      _
    $region27: #{tpu_custom_call.1} parent=1 // pred_check_branch
      %484 = sbr.rel (0) target = $region29
    $region28: #{tpu_custom_call.1} parent=1 // pred_region
      %486 = vsyncadd [#allocation4], 0
      %s488 = sshll.u32 [#allocation8], 4
      %s489 = int_to_ptr.vmem [resolvable:$true] %s488
      %s490 = sshll.u32 %s3, 4
      %s491 = int_to_ptr.hbm [resolvable:$true] %s490
      %493 = dma.vmem_to_hbm [thread:$0]  %s489, 128, %s491, [#allocation4]
    $region29: #{tpu_custom_call.1} parent=1 // pred_fallthru
      _
    // Predicated region
    $region30: #{tpu_custom_call.1} parent=1 // pred_check
      _
    $region31: #{tpu_custom_call.1} parent=1 // pred_check_branch
      %495 = sbr.rel (0) target = $region33
    $region32: #{tpu_custom_call.1} parent=1 // pred_region
      %497 = dma.done [#allocation4], 128
    $region33: #{tpu_custom_call.1} parent=1 // pred_fallthru
      _
    %498 = vsyncpa [#allocation3], 1
    %499 = vsyncpa [#allocation6], 1
    %500 = vsyncpa [#allocation4], 1

</llo_original>
